<compile_context>
chip_gen: v6e
topology: v6e:2x2x1
jax: 0.10.0
libtpu: 0.0.40
codegen_flags: <defaults>
</compile_context>

<pallas_src>
import numpy as np
import jax
import jax.numpy as jnp
from jax.experimental import pallas as pl
from jax.experimental.pallas import tpu as pltpu

# Small, module-consistent sizes.
B, S, E = 2, 8, 32
HEADS = 4
DH = E // HEADS
EXPANSION = 4
FF = E * EXPANSION
LN_EPS = 1e-5
INV_SQRT2 = 0.7071067811865476


def _erf_approx(x):
    # Exact-GELU needs erf; use the Abramowitz & Stegun 7.1.26 rational
    # approximation (max abs err ~1.5e-7) built from exp/mul/add and one exact
    # divide (the approx EUP reciprocal was the source of the previous 1e-3
    # numerics failure).
    a1, a2, a3, a4, a5 = 0.254829592, -0.284496736, 1.421413741, -1.453152027, 1.061405429
    p = 0.3275911
    sgn = jnp.where(x >= 0.0, 1.0, -1.0)
    ax = jnp.abs(x)
    t = 1.0 / (1.0 + p * ax)
    poly = ((((a5 * t + a4) * t + a3) * t + a2) * t + a1) * t
    return sgn * (1.0 - poly * jnp.exp(-ax * ax))


def _layernorm(x, w, b):
    mu = jnp.mean(x, axis=-1, keepdims=True)
    var = jnp.mean((x - mu) ** 2, axis=-1, keepdims=True)
    return (x - mu) * jax.lax.rsqrt(var + LN_EPS) * w + b


def encoder_block_kernel(x_ref, wvp_ref, w1_ref, w2_ref, vec_ref, out_ref):
    x = x_ref[...]                                  # [B*S, E]
    wvp = wvp_ref[...]                              # [2E, E]
    wv, wp = wvp[:E, :], wvp[E:, :]                 # [E, E] each
    vec = vec_ref[...]                              # [8, FF]
    b1 = vec[0:1, :]                                # [1, FF]
    ln1w, ln1b = vec[1:2, :E], vec[2:3, :E]
    ln2w, ln2b = vec[3:4, :E], vec[4:5, :E]
    bv, bp, b2 = vec[5:6, :E], vec[6:7, :E], vec[7:8, :E]

    # ---- Residual branch 1: LN1 -> MultiAttn -> (+x) ----
    xn = _layernorm(x, ln1w, ln1b)
    v = jnp.dot(xn, wv, preferred_element_type=jnp.float32) + bv        # [B*S, E]

    # The module's einsum 'bnqk,bnvd->bnqd' sums k and v independently and each
    # softmax row sums to 1, so per head the attention output is exactly
    # colsum(V_head)/sqrt(E) broadcast over the sequence; Q/K never matter.
    inv_scale = 1.0 / (float(E) ** 0.5)
    vcs = jnp.concatenate(
        [jnp.sum(v[b * S:(b + 1) * S, :], axis=0, keepdims=True) for b in range(B)],
        axis=0)                                                          # [B, E]
    projc = jnp.dot(vcs * inv_scale, wp,
                    preferred_element_type=jnp.float32) + bp            # [B, E]
    proj = jnp.concatenate(
        [jnp.broadcast_to(projc[b:b + 1, :], (S, E)) for b in range(B)],
        axis=0)                                                          # [B*S, E]
    y = x + proj                                                         # dropoutp = 0

    # ---- Residual branch 2: LN2 -> Feedforward -> (+y) ----
    yn = _layernorm(y, ln2w, ln2b)
    h1 = jnp.dot(yn, w1_ref[...], preferred_element_type=jnp.float32) + b1   # [B*S, FF]
    g = 0.5 * h1 * (1.0 + _erf_approx(h1 * INV_SQRT2))                   # exact (erf) GELU
    h2 = jnp.dot(g, w2_ref[...], preferred_element_type=jnp.float32) + b2
    out_ref[...] = (y + h2).astype(out_ref.dtype)


def _pack_params(params):
    # Weight slab: Wv (rows 0:E) and Wp (rows E:2E) stacked on the sublane axis.
    wvp = jnp.concatenate([params["wv"], params["wp"]], axis=0)          # [2E, E]
    # One (8, 128) f32 tile holding every bias / LayerNorm vector:
    #   row 0 = b1 (full 128 lanes); rows 1..7 use lanes 0:E.
    vec = jnp.zeros((8, FF), jnp.float32)
    vec = vec.at[0, :].set(params["b1"])
    for i, name in enumerate(("ln1_w", "ln1_b", "ln2_w", "ln2_b", "bv", "bp", "b2")):
        vec = vec.at[i + 1, :E].set(params[name])
    return wvp, params["w1"], params["w2"], vec


@jax.jit
def transformer_encoder_block(x, params):
    Bn, Sn, En = x.shape
    assert (Bn, Sn, En) == (B, S, E)
    wvp, w1, w2, vec = _pack_params(params)
    # Single invocation (no grid): everything fits VMEM trivially; whole arrays
    # are mapped as single VMEM blocks by the default BlockSpecs.
    out = pl.pallas_call(
        encoder_block_kernel,
        out_shape=jax.ShapeDtypeStruct((Bn * Sn, En), x.dtype),
    )(x.reshape(Bn * Sn, En), wvp, w1, w2, vec)
    return out.reshape(Bn, Sn, En)


def init_params(key):
    ks = jax.random.split(key, 6)

    def linear(k, fan_in, fan_out):
        # PyTorch nn.Linear default init: U(-1/sqrt(fan_in), 1/sqrt(fan_in)).
        kw, kb = jax.random.split(k)
        bound = 1.0 / np.sqrt(fan_in)
        w = jax.random.uniform(kw, (fan_in, fan_out), jnp.float32, -bound, bound)
        b = jax.random.uniform(kb, (fan_out,), jnp.float32, -bound, bound)
        return w, b

    params = {
        "ln1_w": jnp.ones((E,), jnp.float32),
        "ln1_b": jnp.zeros((E,), jnp.float32),
        "ln2_w": jnp.ones((E,), jnp.float32),
        "ln2_b": jnp.zeros((E,), jnp.float32),
    }
    params["wq"], params["bq"] = linear(ks[0], E, E)   # kept for the faithful reference
    params["wk"], params["bk"] = linear(ks[1], E, E)   # (mathematically dead in forward)
    params["wv"], params["bv"] = linear(ks[2], E, E)
    params["wp"], params["bp"] = linear(ks[3], E, E)
    params["w1"], params["b1"] = linear(ks[4], E, FF)
    params["w2"], params["b2"] = linear(ks[5], FF, E)
    return params


def reference(x, params):
    # Pure-JAX mirror of the PyTorch forward (keeps the full Q/K/softmax path).
    def ln(t, w, b):
        mu = t.mean(-1, keepdims=True)
        var = ((t - mu) ** 2).mean(-1, keepdims=True)
        return (t - mu) / jnp.sqrt(var + LN_EPS) * w + b

    def split(t):  # 'b q (n d) -> b n q d'
        return t.reshape(B, S, HEADS, DH).transpose(0, 2, 1, 3)

    xn = ln(x, params["ln1_w"], params["ln1_b"])
    q = split(xn @ params["wq"] + params["bq"])
    k = split(xn @ params["wk"] + params["bk"])
    v = split(xn @ params["wv"] + params["bv"])
    energy = jnp.einsum("bnqd,bnkd->bnqk", q, k)
    att = jax.nn.softmax(energy, axis=-1) / (E ** 0.5)
    out = jnp.einsum("bnqk,bnvd->bnqd", att, v)  # faithful (k, v summed separately)
    out = out.transpose(0, 2, 1, 3).reshape(B, S, E)
    y = x + (out @ params["wp"] + params["bp"])

    yn = ln(y, params["ln2_w"], params["ln2_b"])
    h1 = yn @ params["w1"] + params["b1"]
    g = 0.5 * h1 * (1.0 + jax.lax.erf(h1 * INV_SQRT2))
    h2 = g @ params["w2"] + params["b2"]
    return y + h2


if __name__ == "__main__":
    root = jax.random.PRNGKey(0)
    k_x, k_p = jax.random.split(root)
    x = jax.random.normal(k_x, (B, S, E), jnp.float32)
    params = init_params(k_p)

    out = jax.block_until_ready(transformer_encoder_block(x, params))
    ref = jax.block_until_ready(reference(x, params))

    assert out.shape == (B, S, E)
    np.testing.assert_allclose(np.asarray(out), np.asarray(ref),
                               atol=1e-3, rtol=1e-3)
    print("KERNEL_OK")
</pallas_src>

<mosaic_0001>
module attributes {stable_mosaic.version = 11 : i64} {
  func.func @encoder_block_kernel(%arg0: memref<16x32xf32, #tpu.memory_space<vmem>>, %arg1: memref<64x32xf32, #tpu.memory_space<vmem>>, %arg2: memref<32x128xf32, #tpu.memory_space<vmem>>, %arg3: memref<128x32xf32, #tpu.memory_space<vmem>>, %arg4: memref<8x128xf32, #tpu.memory_space<vmem>>, %arg5: memref<16x32xf32, #tpu.memory_space<vmem>>) attributes {dimension_semantics = [], scalar_prefetch = 0 : i64, scratch_operands = 0 : i64, tpu.core_type = #tpu.core_type<tc>} {
    %c0 = arith.constant 0 : index
    %c0_0 = arith.constant 0 : index
    %0 = vector.load %arg0[%c0, %c0_0] : memref<16x32xf32, #tpu.memory_space<vmem>>, vector<16x32xf32>
    %c0_1 = arith.constant 0 : index
    %c0_2 = arith.constant 0 : index
    %1 = vector.load %arg1[%c0_1, %c0_2] : memref<64x32xf32, #tpu.memory_space<vmem>>, vector<64x32xf32>
    %2 = vector.extract_strided_slice %1 {offsets = [0, 0], sizes = [32, 32], strides = [1, 1]} : vector<64x32xf32> to vector<32x32xf32>
    %3 = vector.extract_strided_slice %1 {offsets = [32, 0], sizes = [32, 32], strides = [1, 1]} : vector<64x32xf32> to vector<32x32xf32>
    %c0_3 = arith.constant 0 : index
    %c0_4 = arith.constant 0 : index
    %4 = vector.load %arg4[%c0_3, %c0_4] : memref<8x128xf32, #tpu.memory_space<vmem>>, vector<8x128xf32>
    %5 = vector.extract_strided_slice %4 {offsets = [0, 0], sizes = [1, 128], strides = [1, 1]} : vector<8x128xf32> to vector<1x128xf32>
    %6 = vector.extract_strided_slice %4 {offsets = [1, 0], sizes = [1, 32], strides = [1, 1]} : vector<8x128xf32> to vector<1x32xf32>
    %7 = vector.extract_strided_slice %4 {offsets = [2, 0], sizes = [1, 32], strides = [1, 1]} : vector<8x128xf32> to vector<1x32xf32>
    %8 = vector.extract_strided_slice %4 {offsets = [3, 0], sizes = [1, 32], strides = [1, 1]} : vector<8x128xf32> to vector<1x32xf32>
    %9 = vector.extract_strided_slice %4 {offsets = [4, 0], sizes = [1, 32], strides = [1, 1]} : vector<8x128xf32> to vector<1x32xf32>
    %10 = vector.extract_strided_slice %4 {offsets = [5, 0], sizes = [1, 32], strides = [1, 1]} : vector<8x128xf32> to vector<1x32xf32>
    %11 = vector.extract_strided_slice %4 {offsets = [6, 0], sizes = [1, 32], strides = [1, 1]} : vector<8x128xf32> to vector<1x32xf32>
    %12 = vector.extract_strided_slice %4 {offsets = [7, 0], sizes = [1, 32], strides = [1, 1]} : vector<8x128xf32> to vector<1x32xf32>
    %cst = arith.constant dense<0.000000e+00> : vector<16xf32>
    %13 = vector.multi_reduction <add>, %0, %cst [1] : vector<16x32xf32> to vector<16xf32>
    %14 = vector.shape_cast %13 : vector<16xf32> to vector<16x1xf32>
    %cst_5 = arith.constant 3.200000e+01 : f32
    %15 = vector.broadcast %cst_5 : f32 to vector<16x1xf32>
    %16 = arith.divf %14, %15 : vector<16x1xf32>
    %17 = vector.broadcast %16 : vector<16x1xf32> to vector<16x32xf32>
    %18 = arith.subf %0, %17 : vector<16x32xf32>
    %19 = arith.mulf %18, %18 : vector<16x32xf32>
    %cst_6 = arith.constant dense<0.000000e+00> : vector<16xf32>
    %20 = vector.multi_reduction <add>, %19, %cst_6 [1] : vector<16x32xf32> to vector<16xf32>
    %21 = vector.shape_cast %20 : vector<16xf32> to vector<16x1xf32>
    %cst_7 = arith.constant 3.200000e+01 : f32
    %22 = vector.broadcast %cst_7 : f32 to vector<16x1xf32>
    %23 = arith.divf %21, %22 : vector<16x1xf32>
    %24 = vector.broadcast %16 : vector<16x1xf32> to vector<16x32xf32>
    %25 = arith.subf %0, %24 : vector<16x32xf32>
    %cst_8 = arith.constant 9.99999974E-6 : f32
    %26 = vector.broadcast %cst_8 : f32 to vector<16x1xf32>
    %27 = arith.addf %23, %26 : vector<16x1xf32>
    %28 = math.rsqrt %27 : vector<16x1xf32>
    %29 = vector.broadcast %28 : vector<16x1xf32> to vector<16x32xf32>
    %30 = arith.mulf %25, %29 : vector<16x32xf32>
    %31 = vector.broadcast %6 : vector<1x32xf32> to vector<16x32xf32>
    %32 = arith.mulf %30, %31 : vector<16x32xf32>
    %33 = vector.broadcast %7 : vector<1x32xf32> to vector<16x32xf32>
    %34 = arith.addf %32, %33 : vector<16x32xf32>
    %cst_9 = arith.constant dense<0.000000e+00> : vector<16x32xf32>
    %35 = tpu.matmul %34, %2, %cst_9 {dimension_numbers = #tpu.dot_dimension_numbers<[1], [0], [0], [1], [0, 0, 1, 1], [], []>} : vector<16x32xf32>, vector<32x32xf32>, vector<16x32xf32> -> vector<16x32xf32>
    %36 = vector.broadcast %10 : vector<1x32xf32> to vector<16x32xf32>
    %37 = arith.addf %35, %36 : vector<16x32xf32>
    %38 = vector.extract_strided_slice %37 {offsets = [0, 0], sizes = [8, 32], strides = [1, 1]} : vector<16x32xf32> to vector<8x32xf32>
    %cst_10 = arith.constant dense<0.000000e+00> : vector<32xf32>
    %39 = vector.multi_reduction <add>, %38, %cst_10 [0] : vector<8x32xf32> to vector<32xf32>
    %40 = vector.shape_cast %39 : vector<32xf32> to vector<1x32xf32>
    %41 = vector.extract_strided_slice %37 {offsets = [8, 0], sizes = [8, 32], strides = [1, 1]} : vector<16x32xf32> to vector<8x32xf32>
    %cst_11 = arith.constant dense<0.000000e+00> : vector<32xf32>
    %42 = vector.multi_reduction <add>, %41, %cst_11 [0] : vector<8x32xf32> to vector<32xf32>
    %43 = vector.shape_cast %42 : vector<32xf32> to vector<1x32xf32>
    %44 = tpu.concatenate %40, %43 in 0 : vector<1x32xf32>, vector<1x32xf32> -> vector<2x32xf32>
    %cst_12 = arith.constant 0.176776692 : f32
    %45 = vector.broadcast %cst_12 : f32 to vector<2x32xf32>
    %46 = arith.mulf %44, %45 : vector<2x32xf32>
    %cst_13 = arith.constant dense<0.000000e+00> : vector<2x32xf32>
    %47 = tpu.matmul %46, %3, %cst_13 {dimension_numbers = #tpu.dot_dimension_numbers<[1], [0], [0], [1], [0, 0, 1, 1], [], []>} : vector<2x32xf32>, vector<32x32xf32>, vector<2x32xf32> -> vector<2x32xf32>
    %48 = vector.broadcast %11 : vector<1x32xf32> to vector<2x32xf32>
    %49 = arith.addf %47, %48 : vector<2x32xf32>
    %50 = vector.extract_strided_slice %49 {offsets = [0, 0], sizes = [1, 32], strides = [1, 1]} : vector<2x32xf32> to vector<1x32xf32>
    %51 = vector.shape_cast %50 : vector<1x32xf32> to vector<1x32xf32>
    %52 = vector.broadcast %51 : vector<1x32xf32> to vector<8x32xf32>
    %53 = vector.extract_strided_slice %49 {offsets = [1, 0], sizes = [1, 32], strides = [1, 1]} : vector<2x32xf32> to vector<1x32xf32>
    %54 = vector.shape_cast %53 : vector<1x32xf32> to vector<1x32xf32>
    %55 = vector.broadcast %54 : vector<1x32xf32> to vector<8x32xf32>
    %56 = tpu.concatenate %52, %55 in 0 : vector<8x32xf32>, vector<8x32xf32> -> vector<16x32xf32>
    %57 = arith.addf %0, %56 : vector<16x32xf32>
    %cst_14 = arith.constant dense<0.000000e+00> : vector<16xf32>
    %58 = vector.multi_reduction <add>, %57, %cst_14 [1] : vector<16x32xf32> to vector<16xf32>
    %59 = vector.shape_cast %58 : vector<16xf32> to vector<16x1xf32>
    %cst_15 = arith.constant 3.200000e+01 : f32
    %60 = vector.broadcast %cst_15 : f32 to vector<16x1xf32>
    %61 = arith.divf %59, %60 : vector<16x1xf32>
    %62 = vector.broadcast %61 : vector<16x1xf32> to vector<16x32xf32>
    %63 = arith.subf %57, %62 : vector<16x32xf32>
    %64 = arith.mulf %63, %63 : vector<16x32xf32>
    %cst_16 = arith.constant dense<0.000000e+00> : vector<16xf32>
    %65 = vector.multi_reduction <add>, %64, %cst_16 [1] : vector<16x32xf32> to vector<16xf32>
    %66 = vector.shape_cast %65 : vector<16xf32> to vector<16x1xf32>
    %cst_17 = arith.constant 3.200000e+01 : f32
    %67 = vector.broadcast %cst_17 : f32 to vector<16x1xf32>
    %68 = arith.divf %66, %67 : vector<16x1xf32>
    %69 = vector.broadcast %61 : vector<16x1xf32> to vector<16x32xf32>
    %70 = arith.subf %57, %69 : vector<16x32xf32>
    %cst_18 = arith.constant 9.99999974E-6 : f32
    %71 = vector.broadcast %cst_18 : f32 to vector<16x1xf32>
    %72 = arith.addf %68, %71 : vector<16x1xf32>
    %73 = math.rsqrt %72 : vector<16x1xf32>
    %74 = vector.broadcast %73 : vector<16x1xf32> to vector<16x32xf32>
    %75 = arith.mulf %70, %74 : vector<16x32xf32>
    %76 = vector.broadcast %8 : vector<1x32xf32> to vector<16x32xf32>
    %77 = arith.mulf %75, %76 : vector<16x32xf32>
    %78 = vector.broadcast %9 : vector<1x32xf32> to vector<16x32xf32>
    %79 = arith.addf %77, %78 : vector<16x32xf32>
    %c0_19 = arith.constant 0 : index
    %c0_20 = arith.constant 0 : index
    %80 = vector.load %arg2[%c0_19, %c0_20] : memref<32x128xf32, #tpu.memory_space<vmem>>, vector<32x128xf32>
    %cst_21 = arith.constant dense<0.000000e+00> : vector<16x128xf32>
    %81 = tpu.matmul %79, %80, %cst_21 {dimension_numbers = #tpu.dot_dimension_numbers<[1], [0], [0], [1], [0, 0, 1, 1], [], []>} : vector<16x32xf32>, vector<32x128xf32>, vector<16x128xf32> -> vector<16x128xf32>
    %82 = vector.broadcast %5 : vector<1x128xf32> to vector<16x128xf32>
    %83 = arith.addf %81, %82 : vector<16x128xf32>
    %cst_22 = arith.constant 5.000000e-01 : f32
    %84 = vector.broadcast %cst_22 : f32 to vector<16x128xf32>
    %85 = arith.mulf %84, %83 : vector<16x128xf32>
    %cst_23 = arith.constant 0.707106769 : f32
    %86 = vector.broadcast %cst_23 : f32 to vector<16x128xf32>
    %87 = arith.mulf %83, %86 : vector<16x128xf32>
    %cst_24 = arith.constant 0.000000e+00 : f32
    %88 = vector.broadcast %cst_24 : f32 to vector<16x128xf32>
    %89 = arith.cmpf oge, %87, %88 : vector<16x128xf32>
    %cst_25 = arith.constant 1.000000e+00 : f32
    %cst_26 = arith.constant -1.000000e+00 : f32
    %90 = vector.broadcast %cst_25 : f32 to vector<16x128xf32>
    %91 = vector.broadcast %cst_26 : f32 to vector<16x128xf32>
    %92 = arith.select %89, %90, %91 : vector<16x128xi1>, vector<16x128xf32>
    %93 = math.absf %87 : vector<16x128xf32>
    %cst_27 = arith.constant 0.327591091 : f32
    %94 = vector.broadcast %cst_27 : f32 to vector<16x128xf32>
    %95 = arith.mulf %94, %93 : vector<16x128xf32>
    %cst_28 = arith.constant 1.000000e+00 : f32
    %96 = vector.broadcast %cst_28 : f32 to vector<16x128xf32>
    %97 = arith.addf %96, %95 : vector<16x128xf32>
    %cst_29 = arith.constant 1.000000e+00 : f32
    %98 = vector.broadcast %cst_29 : f32 to vector<16x128xf32>
    %99 = arith.divf %98, %97 : vector<16x128xf32>
    %cst_30 = arith.constant 1.06140542 : f32
    %100 = vector.broadcast %cst_30 : f32 to vector<16x128xf32>
    %101 = arith.mulf %100, %99 : vector<16x128xf32>
    %cst_31 = arith.constant -1.45315206 : f32
    %102 = vector.broadcast %cst_31 : f32 to vector<16x128xf32>
    %103 = arith.addf %101, %102 : vector<16x128xf32>
    %104 = arith.mulf %103, %99 : vector<16x128xf32>
    %cst_32 = arith.constant 1.42141378 : f32
    %105 = vector.broadcast %cst_32 : f32 to vector<16x128xf32>
    %106 = arith.addf %104, %105 : vector<16x128xf32>
    %107 = arith.mulf %106, %99 : vector<16x128xf32>
    %cst_33 = arith.constant -0.284496725 : f32
    %108 = vector.broadcast %cst_33 : f32 to vector<16x128xf32>
    %109 = arith.addf %107, %108 : vector<16x128xf32>
    %110 = arith.mulf %109, %99 : vector<16x128xf32>
    %cst_34 = arith.constant 0.254829586 : f32
    %111 = vector.broadcast %cst_34 : f32 to vector<16x128xf32>
    %112 = arith.addf %110, %111 : vector<16x128xf32>
    %113 = arith.mulf %112, %99 : vector<16x128xf32>
    %cst_35 = arith.constant 0.000000e+00 : f32
    %114 = vector.broadcast %cst_35 : f32 to vector<16x128xf32>
    %115 = arith.subf %114, %93 : vector<16x128xf32>
    %116 = arith.mulf %115, %93 : vector<16x128xf32>
    %117 = math.exp %116 : vector<16x128xf32>
    %118 = arith.mulf %113, %117 : vector<16x128xf32>
    %cst_36 = arith.constant 1.000000e+00 : f32
    %119 = vector.broadcast %cst_36 : f32 to vector<16x128xf32>
    %120 = arith.subf %119, %118 : vector<16x128xf32>
    %121 = arith.mulf %92, %120 : vector<16x128xf32>
    %cst_37 = arith.constant 1.000000e+00 : f32
    %122 = vector.broadcast %cst_37 : f32 to vector<16x128xf32>
    %123 = arith.addf %122, %121 : vector<16x128xf32>
    %124 = arith.mulf %85, %123 : vector<16x128xf32>
    %c0_38 = arith.constant 0 : index
    %c0_39 = arith.constant 0 : index
    %125 = vector.load %arg3[%c0_38, %c0_39] : memref<128x32xf32, #tpu.memory_space<vmem>>, vector<128x32xf32>
    %cst_40 = arith.constant dense<0.000000e+00> : vector<16x32xf32>
    %126 = tpu.matmul %124, %125, %cst_40 {dimension_numbers = #tpu.dot_dimension_numbers<[1], [0], [0], [1], [0, 0, 1, 1], [], []>} : vector<16x128xf32>, vector<128x32xf32>, vector<16x32xf32> -> vector<16x32xf32>
    %127 = vector.broadcast %12 : vector<1x32xf32> to vector<16x32xf32>
    %128 = arith.addf %126, %127 : vector<16x32xf32>
    %129 = arith.addf %57, %128 : vector<16x32xf32>
    %c0_41 = arith.constant 0 : index
    %c0_42 = arith.constant 0 : index
    %130 = vector.load %arg5[%c0_41, %c0_42] : memref<16x32xf32, #tpu.memory_space<vmem>>, vector<16x32xf32>
    tpu.vector_store %arg5[%c0_41, %c0_42], %129 {strides = array<i32>} : memref<16x32xf32, #tpu.memory_space<vmem>>, vector<16x32xf32>,
    return
  }
}

</mosaic_0001>

<llo_original>
// kernel: transformer_encoder_block.1
$region0: #{transformer_encoder_block.1}
  #allocation0 [shape = 'u32[]', space=smem, size = 0x4, offset = 0x4, fixed_abs, tag = 'smem constant byte address 0x4 - core index']
  #allocation1 [shape = 'u32[144,128]{1,0:T(1,128)}', space=vmem, size = 0x12000, scoped, tag = 'internal scratch']
  %s0 = inlined_call_operand.vmem [shape: f32[16,32], index: 0, kind: input, shape index: {}]
  %s1 = inlined_call_operand.vmem [shape: f32[64,32], index: 1, kind: input, shape index: {}]
  %s2 = inlined_call_operand.vmem [shape: f32[32,128], index: 2, kind: input, shape index: {}]
  %s3 = inlined_call_operand.vmem [shape: f32[128,32], index: 3, kind: input, shape index: {}]
  %s4 = inlined_call_operand.vmem [shape: f32[8,128], index: 4, kind: input, shape index: {}]
  %s5 = inlined_call_operand.hbm [shape: f32[16,32], index: 5, kind: output, shape index: {}]
  %s6 = sld [smem:[#allocation0]]
  $region30: #{transformer_encoder_block.1} parent=0
    _
  %s8 = ssub.s32 1, %s6
  %s9 = scalar_select 0, %s8, %s6
  $region1: #{transformer_encoder_block.1} parent=0
    #allocation2 [shape = 'u8[8192]{0}', space=vmem, size = 0x2000, scoped, tag = 'output window, operand 0, single buffered']
    #allocation3 [shape = 's32[1]{0}', space=sflag, size = 0x4, scoped, tag = 'scoped memory for transformer_encoder_block.1']
    %10 = vsyncpa [#allocation3], 0
    // Predicated region
    $region2: #{transformer_encoder_block.1} parent=1 // pred_check
      _
    $region3: #{transformer_encoder_block.1} parent=1 // pred_check_branch
      %12 = sbr.rel (0) target = $region5
    $region4: #{transformer_encoder_block.1} parent=1 // pred_region
      _
    $region5: #{transformer_encoder_block.1} parent=1 // pred_fallthru
      _
    // Predicated region
    $region6: #{transformer_encoder_block.1} parent=1 // pred_check
      _
    $region7: #{transformer_encoder_block.1} parent=1 // pred_check_branch
      %14 = sbr.rel (0) target = $region9
    $region8: #{transformer_encoder_block.1} parent=1 // pred_region
      _
    $region9: #{transformer_encoder_block.1} parent=1 // pred_fallthru
      _
    // Predicated region
    $region10: #{transformer_encoder_block.1} parent=1 // pred_check
      _
    $region11: #{transformer_encoder_block.1} parent=1 // pred_check_branch
      %16 = sbr.rel (0) target = $region13
    $region12: #{transformer_encoder_block.1} parent=1 // pred_region
      _
    $region13: #{transformer_encoder_block.1} parent=1 // pred_fallthru
      _
    // Predicated region
    $region14: #{transformer_encoder_block.1} parent=1 // pred_check
      _
    $region15: #{transformer_encoder_block.1} parent=1 // pred_check_branch
      %18 = sbr.rel (0) target = $region17
    $region16: #{transformer_encoder_block.1} parent=1 // pred_region
      _
    $region17: #{transformer_encoder_block.1} parent=1 // pred_fallthru
      _
    // Predicated region
    $region18: #{transformer_encoder_block.1} parent=1 // pred_check
      _
    $region19: #{transformer_encoder_block.1} parent=1 // pred_check_branch
      %20 = sbr.rel (0) target = $region21
    $region20: #{transformer_encoder_block.1} parent=1 // pred_region
      _
    $region21: #{transformer_encoder_block.1} parent=1 // pred_fallthru
      _
    %v21 = vld [vmem:[%s0] sm:$0xff]
    %v22 = vld [vmem:[%s0 + $0x8] sm:$0xff]
    %v23 = vld [vmem:[%s1] sm:$0xff]
    %v24 = vld [vmem:[%s1 + $0x8] sm:$0xff]
    %v25 = vld [vmem:[%s1 + $0x10] sm:$0xff]
    %v26 = vld [vmem:[%s1 + $0x18] sm:$0xff]
    %v27 = vld [vmem:[%s1 + $0x20] sm:$0xff]
    %v28 = vld [vmem:[%s1 + $0x28] sm:$0xff]
    %v29 = vld [vmem:[%s1 + $0x30] sm:$0xff]
    %v30 = vld [vmem:[%s1 + $0x38] sm:$0xff]
    %v31 = vld [vmem:[%s4] sm:$0xff]
    %vm32 = vcmask 261120
    %v33 = vsel %vm32, %v21, 0.0
    %34 = vadd.xlane.f32.xlu0 %v33
    %v35 = vpop.xlane.xlu0 %34
    %v36 = vsel %vm32, %v22, 0.0
    %37 = vadd.xlane.f32.xlu0 %v36
    %v38 = vpop.xlane.xlu0 %37
    %v39 = vrcp.pop 32.0
    %v40 = vmul.f32 %v35, %v39
    %v41 = vmul.f32 %v38, %v39
    %v42 = vsub.f32 %v21, %v40
    %v43 = vsub.f32 %v22, %v41
    %v44 = vmul.f32 %v42, %v42
    %v45 = vmul.f32 %v43, %v43
    %v46 = vsel %vm32, %v44, 0.0
    %47 = vadd.xlane.f32.xlu0 %v46
    %v48 = vpop.xlane.xlu0 %47
    %v49 = vsel %vm32, %v45, 0.0
    %50 = vadd.xlane.f32.xlu0 %v49
    %v51 = vpop.xlane.xlu0 %50
    %v52 = vmul.f32 %v48, %v39
    %v53 = vmul.f32 %v51, %v39
    %v54 = vadd.f32 %v52, 1e-05
    %v55 = vadd.f32 %v53, 1e-05
    %v56 = vrsqrt.pop %v54
    %v57 = vrsqrt.pop %v55
    %v58 = vmul.f32 %v42, %v56
    %v59 = vmul.f32 %v43, %v57
    %v60 = vlaneseq
    %v61 = vshrl.u32 %v60, 7
    %v62 = vsub.s32 1, %v61
    %v63 = vrot.slane %v31, %v62
    %v64 = vmul.f32 %v58, %v63
    %v65 = vmul.f32 %v59, %v63
    %v66 = vlaneseq
    %v67 = vshrl.u32 %v66, 7
    %v68 = vsub.s32 2, %v67
    %v69 = vrot.slane %v31, %v68
    %v70 = vadd.f32 %v64, %v69
    %v71 = vadd.f32 %v65, %v69
    %v72 = vlaneseq
    %v73 = vshrl.u32 %v72, 7
    %v74 = vsub.s32 5, %v73
    %v75 = vrot.slane %v31, %v74
    %v77 = vsel %vm32, %v70, 0
    %v80 = vsel %vm32, %v71, 0
    %82 = vmatprep.subr.mxu0 0.0
    %83 = vmatpush1.msra.mxu0 0.0
    %84 = vmatprep.subr.mxu0 0.0
    %85 = vmatpush1.msra.mxu0 0.0
    %86 = vmatprep.subr.mxu0 0.0
    %87 = vmatpush1.msra.mxu0 0.0
    %88 = vmatprep.subr.mxu0 0.0
    %89 = vmatpush1.msra.mxu0 0.0
    %90 = vmatprep.subr.mxu0 0.0
    %91 = vmatpush1.msra.mxu0 0.0
    %92 = vmatprep.subr.mxu0 0.0
    %93 = vmatpush1.msra.mxu0 0.0
    %94 = vmatprep.subr.mxu0 0.0
    %95 = vmatpush1.msra.mxu0 0.0
    %96 = vmatprep.subr.mxu0 0.0
    %97 = vmatpush1.msra.mxu0 0.0
    %98 = vmatprep.subr.mxu0 0.0
    %99 = vmatpush1.msra.mxu0 0.0
    %100 = vmatprep.subr.mxu0 0.0
    %101 = vmatpush1.msra.mxu0 0.0
    %102 = vmatprep.subr.mxu0 0.0
    %103 = vmatpush1.msra.mxu0 0.0
    %104 = vmatprep.subr.mxu0 0.0
    %105 = vmatpush1.msra.mxu0 0.0
    %106 = vmatprep.subr.mxu0 0.0
    %107 = vmatpush1.msra.mxu0 %v26
    %108 = vmatprep.subr.mxu0 0.0
    %109 = vmatpush1.msra.mxu0 %v25
    %110 = vmatprep.subr.mxu0 0.0
    %111 = vmatpush1.msra.mxu0 %v24
    %112 = vmatprep.subr.mxu0 0.0
    %113 = vmatpush1.msra.mxu0 %v23
    %114 = vmatprep.subr.mxu0 0.0
    %115 = vmatpush2.msra.mxu0 0.0
    %116 = vmatprep.subr.mxu0 0.0
    %117 = vmatpush2.msra.mxu0 0.0
    %118 = vmatprep.subr.mxu0 0.0
    %119 = vmatpush2.msra.mxu0 0.0
    %120 = vmatprep.subr.mxu0 0.0
    %121 = vmatpush2.msra.mxu0 0.0
    %122 = vmatprep.subr.mxu0 0.0
    %123 = vmatpush2.msra.mxu0 0.0
    %124 = vmatprep.subr.mxu0 0.0
    %125 = vmatpush2.msra.mxu0 0.0
    %126 = vmatprep.subr.mxu0 0.0
    %127 = vmatpush2.msra.mxu0 0.0
    %128 = vmatprep.subr.mxu0 0.0
    %129 = vmatpush2.msra.mxu0 0.0
    %130 = vmatprep.subr.mxu0 0.0
    %131 = vmatpush2.msra.mxu0 0.0
    %132 = vmatprep.subr.mxu0 0.0
    %133 = vmatpush2.msra.mxu0 0.0
    %134 = vmatprep.subr.mxu0 0.0
    %135 = vmatpush2.msra.mxu0 0.0
    %136 = vmatprep.subr.mxu0 0.0
    %137 = vmatpush2.msra.mxu0 0.0
    %138 = vmatprep.subr.mxu0 0.0
    %139 = vmatpush2.msra.mxu0 0.0
    %140 = vmatprep.subr.mxu0 0.0
    %141 = vmatpush2.msra.mxu0 0.0
    %142 = vmatprep.subr.mxu0 0.0
    %143 = vmatpush2.msra.mxu0 0.0
    %144 = vmatprep.subr.mxu0 0.0
    %145 = vmatpush2.msra.mxu0 0.0
    %146 = vmatprep.mubr.f32.mxu0 0.0
    %147 = vmatmul.mubr.f32.gmra.mxu0 %v77
    %v148 = vpop.f32.mrf.mxu0
    %v149 = vadd.f32 %v75, %v148
    %v150 = vpop.f32.mrf.mxu0
    %151 = vmatprep.mubr.f32.mxu0 0.0
    %152 = vmatmul.mubr.f32.gmra.mxu0 %v80
    %v153 = vpop.f32.mrf.mxu0
    %v154 = vadd.f32 %v75, %v153
    %v155 = vpop.f32.mrf.mxu0
    %156 = vdwg.mxu0
    %v157 = vsel %vm32, %v149, 0.0
    %v158 = vrot.slane %v157, 4
    %v159 = vadd.f32 %v157, %v158
    %v160 = vrot.slane %v159, 2
    %v161 = vadd.f32 %v159, %v160
    %v162 = vrot.slane %v161, 1
    %v163 = vadd.f32 %v161, %v162
    %v164 = vsel %vm32, %v154, 0.0
    %v165 = vrot.slane %v164, 4
    %v166 = vadd.f32 %v164, %v165
    %v167 = vrot.slane %v166, 2
    %v168 = vadd.f32 %v166, %v167
    %v169 = vrot.slane %v168, 1
    %v170 = vadd.f32 %v168, %v169
    %vm171 = vcmask 1040384
    %v172 = vsel %vm171, %v163, %v170
    %v173 = vmul.f32 %v172, 0.17677669
    %v174 = vlaneseq
    %v175 = vshrl.u32 %v174, 7
    %v176 = vsub.s32 6, %v175
    %v177 = vrot.slane %v31, %v176
    %v179 = vsel %vm32, %v173, 0
    %181 = vmatprep.subr.mxu0 0.0
    %182 = vmatpush1.msra.mxu0 0.0
    %183 = vmatprep.subr.mxu0 0.0
    %184 = vmatpush1.msra.mxu0 0.0
    %185 = vmatprep.subr.mxu0 0.0
    %186 = vmatpush1.msra.mxu0 0.0
    %187 = vmatprep.subr.mxu0 0.0
    %188 = vmatpush1.msra.mxu0 0.0
    %189 = vmatprep.subr.mxu0 0.0
    %190 = vmatpush1.msra.mxu0 0.0
    %191 = vmatprep.subr.mxu0 0.0
    %192 = vmatpush1.msra.mxu0 0.0
    %193 = vmatprep.subr.mxu0 0.0
    %194 = vmatpush1.msra.mxu0 0.0
    %195 = vmatprep.subr.mxu0 0.0
    %196 = vmatpush1.msra.mxu0 0.0
    %197 = vmatprep.subr.mxu0 0.0
    %198 = vmatpush1.msra.mxu0 0.0
    %199 = vmatprep.subr.mxu0 0.0
    %200 = vmatpush1.msra.mxu0 0.0
    %201 = vmatprep.subr.mxu0 0.0
    %202 = vmatpush1.msra.mxu0 0.0
    %203 = vmatprep.subr.mxu0 0.0
    %204 = vmatpush1.msra.mxu0 0.0
    %205 = vmatprep.subr.mxu0 0.0
    %206 = vmatpush1.msra.mxu0 %v30
    %207 = vmatprep.subr.mxu0 0.0
    %208 = vmatpush1.msra.mxu0 %v29
    %209 = vmatprep.subr.mxu0 0.0
    %210 = vmatpush1.msra.mxu0 %v28
    %211 = vmatprep.subr.mxu0 0.0
    %212 = vmatpush1.msra.mxu0 %v27
    %213 = vmatprep.subr.mxu0 0.0
    %214 = vmatpush2.msra.mxu0 0.0
    %215 = vmatprep.subr.mxu0 0.0
    %216 = vmatpush2.msra.mxu0 0.0
    %217 = vmatprep.subr.mxu0 0.0
    %218 = vmatpush2.msra.mxu0 0.0
    %219 = vmatprep.subr.mxu0 0.0
    %220 = vmatpush2.msra.mxu0 0.0
    %221 = vmatprep.subr.mxu0 0.0
    %222 = vmatpush2.msra.mxu0 0.0
    %223 = vmatprep.subr.mxu0 0.0
    %224 = vmatpush2.msra.mxu0 0.0
    %225 = vmatprep.subr.mxu0 0.0
    %226 = vmatpush2.msra.mxu0 0.0
    %227 = vmatprep.subr.mxu0 0.0
    %228 = vmatpush2.msra.mxu0 0.0
    %229 = vmatprep.subr.mxu0 0.0
    %230 = vmatpush2.msra.mxu0 0.0
    %231 = vmatprep.subr.mxu0 0.0
    %232 = vmatpush2.msra.mxu0 0.0
    %233 = vmatprep.subr.mxu0 0.0
    %234 = vmatpush2.msra.mxu0 0.0
    %235 = vmatprep.subr.mxu0 0.0
    %236 = vmatpush2.msra.mxu0 0.0
    %237 = vmatprep.subr.mxu0 0.0
    %238 = vmatpush2.msra.mxu0 0.0
    %239 = vmatprep.subr.mxu0 0.0
    %240 = vmatpush2.msra.mxu0 0.0
    %241 = vmatprep.subr.mxu0 0.0
    %242 = vmatpush2.msra.mxu0 0.0
    %243 = vmatprep.subr.mxu0 0.0
    %244 = vmatpush2.msra.mxu0 0.0
    %245 = vmatprep.mubr.f32.mxu0 0.0
    %246 = vmatmul.mubr.f32.gmra.mxu0 %v179
    %v247 = vpop.f32.mrf.mxu0
    %v248 = vadd.f32 %v177, %v247
    %v249 = vpop.f32.mrf.mxu0
    %250 = vdwg.mxu0
    %v251 = vlaneseq
    %v252 = vshrl.u32 %v251, 7
    %v253 = vsub.s32 0, %v252
    %v254 = vrot.slane %v248, %v253
    %v255 = vlaneseq
    %v256 = vshrl.u32 %v255, 7
    %v257 = vsub.s32 1, %v256
    %v258 = vrot.slane %v248, %v257
    %v259 = vadd.f32 %v21, %v254
    %v260 = vadd.f32 %v22, %v258
    %v261 = vsel %vm32, %v259, 0.0
    %262 = vadd.xlane.f32.xlu0 %v261
    %v263 = vpop.xlane.xlu0 %262
    %v264 = vsel %vm32, %v260, 0.0
    %265 = vadd.xlane.f32.xlu0 %v264
    %v266 = vpop.xlane.xlu0 %265
    %v267 = vmul.f32 %v263, %v39
    %v268 = vmul.f32 %v266, %v39
    %v269 = vsub.f32 %v259, %v267
    %v270 = vsub.f32 %v260, %v268
    %v271 = vmul.f32 %v269, %v269
    %v272 = vmul.f32 %v270, %v270
    %v273 = vsel %vm32, %v271, 0.0
    %274 = vadd.xlane.f32.xlu0 %v273
    %v275 = vpop.xlane.xlu0 %274
    %v276 = vsel %vm32, %v272, 0.0
    %277 = vadd.xlane.f32.xlu0 %v276
    %v278 = vpop.xlane.xlu0 %277
    %v279 = vmul.f32 %v275, %v39
    %v280 = vmul.f32 %v278, %v39
    %v281 = vadd.f32 %v279, 1e-05
    %v282 = vadd.f32 %v280, 1e-05
    %v283 = vrsqrt.pop %v281
    %v284 = vrsqrt.pop %v282
    %v285 = vmul.f32 %v269, %v283
    %v286 = vmul.f32 %v270, %v284
    %v287 = vlaneseq
    %v288 = vshrl.u32 %v287, 7
    %v289 = vsub.s32 3, %v288
    %v290 = vrot.slane %v31, %v289
    %v291 = vmul.f32 %v285, %v290
    %v292 = vmul.f32 %v286, %v290
    %v293 = vlaneseq
    %v294 = vshrl.u32 %v293, 7
    %v295 = vsub.s32 4, %v294
    %v296 = vrot.slane %v31, %v295
    %v297 = vadd.f32 %v291, %v296
    %v298 = vadd.f32 %v292, %v296
    %v299 = vld [vmem:[%s2] sm:$0xff]
    %v300 = vld [vmem:[%s2 + $0x8] sm:$0xff]
    %v301 = vld [vmem:[%s2 + $0x10] sm:$0xff]
    %v302 = vld [vmem:[%s2 + $0x18] sm:$0xff]
    %v303 = vlaneseq
    %v304 = vshrl.u32 %v303, 7
    %v305 = vsub.s32 0, %v304
    %v306 = vrot.slane %v31, %v305
    %v308 = vsel %vm32, %v297, 0
    %v311 = vsel %vm32, %v298, 0
    %313 = vmatprep.subr.mxu0 0.0
    %314 = vmatpush1.msra.mxu0 0.0
    %315 = vmatprep.subr.mxu0 0.0
    %316 = vmatpush1.msra.mxu0 0.0
    %317 = vmatprep.subr.mxu0 0.0
    %318 = vmatpush1.msra.mxu0 0.0
    %319 = vmatprep.subr.mxu0 0.0
    %320 = vmatpush1.msra.mxu0 0.0
    %321 = vmatprep.subr.mxu0 0.0
    %322 = vmatpush1.msra.mxu0 0.0
    %323 = vmatprep.subr.mxu0 0.0
    %324 = vmatpush1.msra.mxu0 0.0
    %325 = vmatprep.subr.mxu0 0.0
    %326 = vmatpush1.msra.mxu0 0.0
    %327 = vmatprep.subr.mxu0 0.0
    %328 = vmatpush1.msra.mxu0 0.0
    %329 = vmatprep.subr.mxu0 0.0
    %330 = vmatpush1.msra.mxu0 0.0
    %331 = vmatprep.subr.mxu0 0.0
    %332 = vmatpush1.msra.mxu0 0.0
    %333 = vmatprep.subr.mxu0 0.0
    %334 = vmatpush1.msra.mxu0 0.0
    %335 = vmatprep.subr.mxu0 0.0
    %336 = vmatpush1.msra.mxu0 0.0
    %337 = vmatprep.subr.mxu0 0.0
    %338 = vmatpush1.msra.mxu0 %v302
    %339 = vmatprep.subr.mxu0 0.0
    %340 = vmatpush1.msra.mxu0 %v301
    %341 = vmatprep.subr.mxu0 0.0
    %342 = vmatpush1.msra.mxu0 %v300
    %343 = vmatprep.subr.mxu0 0.0
    %344 = vmatpush1.msra.mxu0 %v299
    %345 = vmatprep.subr.mxu0 0.0
    %346 = vmatpush2.msra.mxu0 0.0
    %347 = vmatprep.subr.mxu0 0.0
    %348 = vmatpush2.msra.mxu0 0.0
    %349 = vmatprep.subr.mxu0 0.0
    %350 = vmatpush2.msra.mxu0 0.0
    %351 = vmatprep.subr.mxu0 0.0
    %352 = vmatpush2.msra.mxu0 0.0
    %353 = vmatprep.subr.mxu0 0.0
    %354 = vmatpush2.msra.mxu0 0.0
    %355 = vmatprep.subr.mxu0 0.0
    %356 = vmatpush2.msra.mxu0 0.0
    %357 = vmatprep.subr.mxu0 0.0
    %358 = vmatpush2.msra.mxu0 0.0
    %359 = vmatprep.subr.mxu0 0.0
    %360 = vmatpush2.msra.mxu0 0.0
    %361 = vmatprep.subr.mxu0 0.0
    %362 = vmatpush2.msra.mxu0 0.0
    %363 = vmatprep.subr.mxu0 0.0
    %364 = vmatpush2.msra.mxu0 0.0
    %365 = vmatprep.subr.mxu0 0.0
    %366 = vmatpush2.msra.mxu0 0.0
    %367 = vmatprep.subr.mxu0 0.0
    %368 = vmatpush2.msra.mxu0 0.0
    %369 = vmatprep.subr.mxu0 0.0
    %370 = vmatpush2.msra.mxu0 0.0
    %371 = vmatprep.subr.mxu0 0.0
    %372 = vmatpush2.msra.mxu0 0.0
    %373 = vmatprep.subr.mxu0 0.0
    %374 = vmatpush2.msra.mxu0 0.0
    %375 = vmatprep.subr.mxu0 0.0
    %376 = vmatpush2.msra.mxu0 0.0
    %377 = vmatprep.mubr.f32.mxu0 0.0
    %378 = vmatmul.mubr.f32.gmra.mxu0 %v308
    %v379 = vpop.f32.mrf.mxu0
    %v380 = vadd.f32 %v306, %v379
    %v381 = vpop.f32.mrf.mxu0
    %382 = vmatprep.mubr.f32.mxu0 0.0
    %383 = vmatmul.mubr.f32.gmra.mxu0 %v311
    %v384 = vpop.f32.mrf.mxu0
    %v385 = vadd.f32 %v306, %v384
    %v386 = vpop.f32.mrf.mxu0
    %387 = vdwg.mxu0
    %v388 = vmul.f32 %v380, 0.5
    %v389 = vmul.f32 %v385, 0.5
    %v390 = vmul.f32 %v380, 0.70710677
    %v391 = vmul.f32 %v385, 0.70710677
    %vm392 = vcmp.ge.f32.partialorder %v390, 0.0
    %vm393 = vcmp.ge.f32.partialorder %v391, 0.0
    %v394 = vsel %vm392, 1.0, -1.0
    %v395 = vsel %vm393, 1.0, -1.0
    %v396 = vand.u32 2147483647, %v390
    %v397 = vand.u32 2147483647, %v391
    %v398 = vmul.f32 %v396, 0.3275911
    %v399 = vmul.f32 %v397, 0.3275911
    %v400 = vadd.f32 %v398, 1.0
    %v401 = vadd.f32 %v399, 1.0
    %v402 = vrcp.pop %v400
    %v403 = vmul.f32 1.0, %v402
    %v404 = vrcp.pop %v401
    %v405 = vmul.f32 1.0, %v404
    %v406 = vmul.f32 %v403, 1.0614054
    %v407 = vmul.f32 %v405, 1.0614054
    %v408 = vadd.f32 %v406, -1.4531521
    %v409 = vadd.f32 %v407, -1.4531521
    %v410 = vmul.f32 %v408, %v403
    %v411 = vmul.f32 %v409, %v405
    %v412 = vadd.f32 %v410, 1.4214138
    %v413 = vadd.f32 %v411, 1.4214138
    %v414 = vmul.f32 %v412, %v403
    %v415 = vmul.f32 %v413, %v405
    %v416 = vadd.f32 %v414, -0.28449672
    %v417 = vadd.f32 %v415, -0.28449672
    %v418 = vmul.f32 %v416, %v403
    %v419 = vmul.f32 %v417, %v405
    %v420 = vadd.f32 %v418, 0.2548296
    %v421 = vadd.f32 %v419, 0.2548296
    %v422 = vmul.f32 %v420, %v403
    %v423 = vmul.f32 %v421, %v405
    %v424 = vsub.f32 0.0, %v396
    %v425 = vsub.f32 0.0, %v397
    %v426 = vmul.f32 %v424, %v396
    %v427 = vmul.f32 %v425, %v397
    %v428 = vmul.f32 %v426, 1.442695
    %v429 = vpow.pop %v428
    %v430 = vmul.f32 %v427, 1.442695
    %v431 = vpow.pop %v430
    %v432 = vmul.f32 %v422, %v429
    %v433 = vmul.f32 %v423, %v431
    %v434 = vsub.f32 1.0, %v432
    %v435 = vsub.f32 1.0, %v433
    %v436 = vmul.f32 %v394, %v434
    %v437 = vmul.f32 %v395, %v435
    %v438 = vadd.f32 %v436, 1.0
    %v439 = vadd.f32 %v437, 1.0
    %v440 = vmul.f32 %v388, %v438
    %v441 = vmul.f32 %v389, %v439
    %v442 = vld [vmem:[%s3] sm:$0xff]
    %v443 = vld [vmem:[%s3 + $0x8] sm:$0xff]
    %v444 = vld [vmem:[%s3 + $0x10] sm:$0xff]
    %v445 = vld [vmem:[%s3 + $0x18] sm:$0xff]
    %v446 = vld [vmem:[%s3 + $0x20] sm:$0xff]
    %v447 = vld [vmem:[%s3 + $0x28] sm:$0xff]
    %v448 = vld [vmem:[%s3 + $0x30] sm:$0xff]
    %v449 = vld [vmem:[%s3 + $0x38] sm:$0xff]
    %v450 = vld [vmem:[%s3 + $0x40] sm:$0xff]
    %v451 = vld [vmem:[%s3 + $0x48] sm:$0xff]
    %v452 = vld [vmem:[%s3 + $0x50] sm:$0xff]
    %v453 = vld [vmem:[%s3 + $0x58] sm:$0xff]
    %v454 = vld [vmem:[%s3 + $0x60] sm:$0xff]
    %v455 = vld [vmem:[%s3 + $0x68] sm:$0xff]
    %v456 = vld [vmem:[%s3 + $0x70] sm:$0xff]
    %v457 = vld [vmem:[%s3 + $0x78] sm:$0xff]
    %v458 = vlaneseq
    %v459 = vshrl.u32 %v458, 7
    %v460 = vsub.s32 7, %v459
    %v461 = vrot.slane %v31, %v460
    %462 = vmatprep.subr.mxu0 0.0
    %463 = vmatpush1.msra.mxu0 %v457
    %464 = vmatprep.subr.mxu0 0.0
    %465 = vmatpush1.msra.mxu0 %v456
    %466 = vmatprep.subr.mxu0 0.0
    %467 = vmatpush1.msra.mxu0 %v455
    %468 = vmatprep.subr.mxu0 0.0
    %469 = vmatpush1.msra.mxu0 %v454
    %470 = vmatprep.subr.mxu0 0.0
    %471 = vmatpush1.msra.mxu0 %v453
    %472 = vmatprep.subr.mxu0 0.0
    %473 = vmatpush1.msra.mxu0 %v452
    %474 = vmatprep.subr.mxu0 0.0
    %475 = vmatpush1.msra.mxu0 %v451
    %476 = vmatprep.subr.mxu0 0.0
    %477 = vmatpush1.msra.mxu0 %v450
    %478 = vmatprep.subr.mxu0 0.0
    %479 = vmatpush1.msra.mxu0 %v449
    %480 = vmatprep.subr.mxu0 0.0
    %481 = vmatpush1.msra.mxu0 %v448
    %482 = vmatprep.subr.mxu0 0.0
    %483 = vmatpush1.msra.mxu0 %v447
    %484 = vmatprep.subr.mxu0 0.0
    %485 = vmatpush1.msra.mxu0 %v446
    %486 = vmatprep.subr.mxu0 0.0
    %487 = vmatpush1.msra.mxu0 %v445
    %488 = vmatprep.subr.mxu0 0.0
    %489 = vmatpush1.msra.mxu0 %v444
    %490 = vmatprep.subr.mxu0 0.0
    %491 = vmatpush1.msra.mxu0 %v443
    %492 = vmatprep.subr.mxu0 0.0
    %493 = vmatpush1.msra.mxu0 %v442
    %494 = vmatprep.subr.mxu0 0.0
    %495 = vmatpush2.msra.mxu0 0.0
    %496 = vmatprep.subr.mxu0 0.0
    %497 = vmatpush2.msra.mxu0 0.0
    %498 = vmatprep.subr.mxu0 0.0
    %499 = vmatpush2.msra.mxu0 0.0
    %500 = vmatprep.subr.mxu0 0.0
    %501 = vmatpush2.msra.mxu0 0.0
    %502 = vmatprep.subr.mxu0 0.0
    %503 = vmatpush2.msra.mxu0 0.0
    %504 = vmatprep.subr.mxu0 0.0
    %505 = vmatpush2.msra.mxu0 0.0
    %506 = vmatprep.subr.mxu0 0.0
    %507 = vmatpush2.msra.mxu0 0.0
    %508 = vmatprep.subr.mxu0 0.0
    %509 = vmatpush2.msra.mxu0 0.0
    %510 = vmatprep.subr.mxu0 0.0
    %511 = vmatpush2.msra.mxu0 0.0
    %512 = vmatprep.subr.mxu0 0.0
    %513 = vmatpush2.msra.mxu0 0.0
    %514 = vmatprep.subr.mxu0 0.0
    %515 = vmatpush2.msra.mxu0 0.0
    %516 = vmatprep.subr.mxu0 0.0
    %517 = vmatpush2.msra.mxu0 0.0
    %518 = vmatprep.subr.mxu0 0.0
    %519 = vmatpush2.msra.mxu0 0.0
    %520 = vmatprep.subr.mxu0 0.0
    %521 = vmatpush2.msra.mxu0 0.0
    %522 = vmatprep.subr.mxu0 0.0
    %523 = vmatpush2.msra.mxu0 0.0
    %524 = vmatprep.subr.mxu0 0.0
    %525 = vmatpush2.msra.mxu0 0.0
    %526 = vmatprep.mubr.f32.mxu0 0.0
    %527 = vmatmul.mubr.f32.gmra.mxu0 %v440
    %v528 = vpop.f32.mrf.mxu0
    %v529 = vadd.f32 %v461, %v528
    %v530 = vpop.f32.mrf.mxu0
    %531 = vmatprep.mubr.f32.mxu0 0.0
    %532 = vmatmul.mubr.f32.gmra.mxu0 %v441
    %v533 = vpop.f32.mrf.mxu0
    %v534 = vadd.f32 %v461, %v533
    %v535 = vpop.f32.mrf.mxu0
    %536 = vdwg.mxu0
    %v537 = vadd.f32 %v259, %v529
    %v538 = vadd.f32 %v260, %v534
    %539 = vst.msk [vmem:[#allocation2] sm:$0xff] %vm32, %v537
    %540 = vst.msk [vmem:[#allocation2 + $0x8] sm:$0xff] %vm32, %v538
    // Predicated region
    $region22: #{transformer_encoder_block.1} parent=1 // pred_check
      _
    $region23: #{transformer_encoder_block.1} parent=1 // pred_check_branch
      %542 = sbr.rel (0) target = $region25
    $region24: #{transformer_encoder_block.1} parent=1 // pred_region
      %s544 = ssub.s32 256, 256
      %545 = vsyncadd [#allocation3], %s544
      %s546 = sshll.u32 [#allocation2], 4
      %s547 = int_to_ptr.vmem [resolvable:$true] %s546
      %552 = dma.vmem_to_hbm [thread:$0]  %s547, 256, %s5, [#allocation3], 128, 128, 8
    $region25: #{transformer_encoder_block.1} parent=1 // pred_fallthru
      _
    // Predicated region
    $region26: #{transformer_encoder_block.1} parent=1 // pred_check
      _
    $region27: #{transformer_encoder_block.1} parent=1 // pred_check_branch
      %554 = sbr.rel (0) target = $region29
    $region28: #{transformer_encoder_block.1} parent=1 // pred_region
      %555 = dma.done [#allocation3], 256
    $region29: #{transformer_encoder_block.1} parent=1 // pred_fallthru
      _
    %556 = vsyncpa [#allocation3], 1

</llo_original>
